<compile_context>
chip_gen: v6e
topology: v6e:2x2x1
jax: 0.10.0
libtpu: 0.0.40
codegen_flags: <defaults>
</compile_context>

<pallas_src>
import jax
import jax.numpy as jnp
from jax.experimental import pallas as pl
from jax.experimental.pallas import tpu as pltpu

MXU_PAD = 128  # fc4 weight/bias padded to 128 output lanes for the matmul only


def _leaky_relu(x, slope=0.2):
    return jnp.where(x > 0, x, slope * x)


def make_discriminator_kernel(out_features):
    def kernel(x_ref,
               w1_ref, b1_ref,
               w2_ref, b2_ref,
               w3_ref, b3_ref,
               w4_ref, b4_ref,
               out_ref):
        # Entire 4-layer MLP fused on one batch tile: bf16 matmuls hit the MXU with f32
        # accumulation; bias-add + LeakyReLU run in f32 on the VPU.
        h = x_ref[...].astype(jnp.bfloat16)  # f32 read from HBM, cast in-kernel

        h = jnp.dot(h, w1_ref[...], preferred_element_type=jnp.float32) + b1_ref[...]
        h = _leaky_relu(h).astype(jnp.bfloat16)
        # dropout (eval mode) -> identity

        h = jnp.dot(h, w2_ref[...], preferred_element_type=jnp.float32) + b2_ref[...]
        h = _leaky_relu(h).astype(jnp.bfloat16)
        # dropout (eval mode) -> identity

        h = jnp.dot(h, w3_ref[...], preferred_element_type=jnp.float32) + b3_ref[...]
        h = _leaky_relu(h).astype(jnp.bfloat16)
        # dropout (eval mode) -> identity

        # fc4 matmul uses the 128-lane padded weight; only the real output lanes are stored.
        logits = jnp.dot(h, w4_ref[...], preferred_element_type=jnp.float32) + b4_ref[...]
        out_ref[...] = logits[:, :out_features].astype(out_ref.dtype)

    return kernel


def _choose_tile_b(B):
    # Single tile up to 2048 rows (block dims == full array dims, always legal, no padding,
    # no pointless grid split on single-TC v5e/v6e).  For larger batches pick a tile that
    # divides B (avoids a pad pass) and, when possible, yields an even grid so v7x's two
    # TensorCores get balanced tile counts.
    cap = 2048
    if B <= cap:
        return B
    for t in (2048, 1024, 512, 256):
        if B % t == 0 and (B // t) % 2 == 0:
            return t
    for t in (2048, 1024, 512, 256):
        if B % t == 0:
            return t
    return 1024  # ragged batch: fall back to padding up to a tile multiple


def discriminator_forward(x, params, *, tile_b=None):
    """x: [B, in_features] float32. params: dict of (in,out) weights and (1,out) biases."""
    B, in_features = x.shape
    out_features = params["w4"].shape[1]
    assert out_features <= MXU_PAD

    if tile_b is None:
        tile_b = _choose_tile_b(B)
    B_pad = ((B + tile_b - 1) // tile_b) * tile_b
    if B_pad != B:
        x = jnp.pad(x, ((0, B_pad - B), (0, 0)))  # f32 pad only (no dtype-convert pass)

    # Pad fc4 to 128 output lanes for the MXU matmul; the store slices back to out_features.
    w4p = jnp.pad(params["w4"], ((0, 0), (0, MXU_PAD - out_features)))
    b4p = jnp.pad(params["b4"], ((0, 0), (0, MXU_PAD - out_features)))

    flat_params = [
        params["w1"].astype(jnp.bfloat16), params["b1"].astype(jnp.float32),
        params["w2"].astype(jnp.bfloat16), params["b2"].astype(jnp.float32),
        params["w3"].astype(jnp.bfloat16), params["b3"].astype(jnp.float32),
        w4p.astype(jnp.bfloat16), b4p.astype(jnp.float32),
    ]

    grid = (B_pad // tile_b,)

    def replicated_spec(shape):
        # Grid-invariant weight/bias block (all params are 2D).
        return pl.BlockSpec(shape, lambda i: (0, 0))

    in_specs = [pl.BlockSpec((tile_b, in_features), lambda i: (i, 0))]
    in_specs += [replicated_spec(arr.shape) for arr in flat_params]

    out = pl.pallas_call(
        make_discriminator_kernel(out_features),
        out_shape=jax.ShapeDtypeStruct((B_pad, out_features), jnp.float32),
        grid_spec=pltpu.PrefetchScalarGridSpec(
            num_scalar_prefetch=0,
            grid=grid,
            in_specs=in_specs,
            out_specs=pl.BlockSpec((tile_b, out_features), lambda i: (i, 0)),
        ),
        compiler_params=pltpu.CompilerParams(
            dimension_semantics=("parallel",),
            vmem_limit_bytes=48 * 1024 * 1024,
        ),
    )(x, *flat_params)

    return out[:B] if B_pad != B else out


def init_params(key, in_features, out_features):
    """Deterministic init mimicking nn.Linear's uniform(-1/sqrt(fan_in), 1/sqrt(fan_in)).
    Weights stored transposed vs PyTorch: W_k has shape (in_k, out_k) so y = x @ W + b."""
    dims = [(in_features, 128), (128, 64), (64, 32), (32, out_features)]
    params = {}
    for idx, (fi, fo) in enumerate(dims, start=1):
        key, kw, kb = jax.random.split(key, 3)
        bound = 1.0 / jnp.sqrt(jnp.float32(fi))
        params[f"w{idx}"] = jax.random.uniform(
            kw, (fi, fo), jnp.float32, minval=-bound, maxval=bound)
        params[f"b{idx}"] = jax.random.uniform(
            kb, (1, fo), jnp.float32, minval=-bound, maxval=bound)
    return params


def reference_forward(x, params):
    """Pure-JAX reference mirroring the kernel's bf16-input / f32-accumulate matmuls."""
    h = x.astype(jnp.bfloat16)
    for idx in range(1, 4):
        w = params[f"w{idx}"].astype(jnp.bfloat16)
        h = jnp.dot(h, w, preferred_element_type=jnp.float32) + params[f"b{idx}"]
        h = jnp.where(h > 0, h, 0.2 * h)
        h = h.astype(jnp.bfloat16)
    w4 = params["w4"].astype(jnp.bfloat16)
    return jnp.dot(h, w4, preferred_element_type=jnp.float32) + params["b4"]


if __name__ == "__main__":
    key = jax.random.PRNGKey(0)

    # Input: batch=32 images of shape [4, 8, 8] -> flattened in_features = 256.
    B, C, H, W = 32, 4, 8, 8
    in_features = C * H * W
    out_features = 1

    key, kx, kp = jax.random.split(key, 3)
    x_img = jax.random.normal(kx, (B, C, H, W), jnp.float32)
    params = init_params(kp, in_features, out_features)

    # x.view(batch_size, -1) equivalent (glue in plain JAX).
    x_flat = x_img.reshape(B, -1)

    out = jax.block_until_ready(discriminator_forward(x_flat, params))

    ref = reference_forward(x_flat, params)
    assert out.shape == (B, out_features)
    assert jnp.allclose(out, ref, atol=1e-2, rtol=1e-2), "mismatch vs reference"

    print("KERNEL_OK")
</pallas_src>

<mosaic_0001>
module attributes {stable_mosaic.version = 11 : i64} {
  func.func @kernel(%arg0: i32, %arg1: memref<32x256xf32, #tpu.memory_space<vmem>>, %arg2: memref<256x128xbf16, #tpu.memory_space<vmem>>, %arg3: memref<1x128xf32, #tpu.memory_space<vmem>>, %arg4: memref<128x64xbf16, #tpu.memory_space<vmem>>, %arg5: memref<1x64xf32, #tpu.memory_space<vmem>>, %arg6: memref<64x32xbf16, #tpu.memory_space<vmem>>, %arg7: memref<1x32xf32, #tpu.memory_space<vmem>>, %arg8: memref<32x128xbf16, #tpu.memory_space<vmem>>, %arg9: memref<1x128xf32, #tpu.memory_space<vmem>>, %arg10: memref<32x1xf32, #tpu.memory_space<vmem>>) attributes {dimension_semantics = [#tpu.dimension_semantics<parallel>], iteration_bounds = array<i64: 1>, scalar_prefetch = 0 : i64, scratch_operands = 0 : i64, tpu.core_type = #tpu.core_type<tc>, window_params = [{transform_indices = @transform_0, window_bounds = array<i64: 32, 256>}, {pipeline_mode = #tpu.pipeline_mode<synchronous>, transform_indices = @transform_1, window_bounds = array<i64: 256, 128>}, {pipeline_mode = #tpu.pipeline_mode<synchronous>, transform_indices = @transform_2, window_bounds = array<i64: 1, 128>}, {pipeline_mode = #tpu.pipeline_mode<synchronous>, transform_indices = @transform_3, window_bounds = array<i64: 128, 64>}, {pipeline_mode = #tpu.pipeline_mode<synchronous>, transform_indices = @transform_4, window_bounds = array<i64: 1, 64>}, {pipeline_mode = #tpu.pipeline_mode<synchronous>, transform_indices = @transform_5, window_bounds = array<i64: 64, 32>}, {pipeline_mode = #tpu.pipeline_mode<synchronous>, transform_indices = @transform_6, window_bounds = array<i64: 1, 32>}, {pipeline_mode = #tpu.pipeline_mode<synchronous>, transform_indices = @transform_7, window_bounds = array<i64: 32, 128>}, {pipeline_mode = #tpu.pipeline_mode<synchronous>, transform_indices = @transform_8, window_bounds = array<i64: 1, 128>}, {transform_indices = @transform_9, window_bounds = array<i64: 32, 1>}]} {
    %c0 = arith.constant 0 : index
    %c0_0 = arith.constant 0 : index
    %0 = vector.load %arg1[%c0, %c0_0] : memref<32x256xf32, #tpu.memory_space<vmem>>, vector<32x256xf32>
    %1 = arith.truncf %0 : vector<32x256xf32> to vector<32x256xbf16>
    %c0_1 = arith.constant 0 : index
    %c0_2 = arith.constant 0 : index
    %2 = vector.load %arg2[%c0_1, %c0_2] : memref<256x128xbf16, #tpu.memory_space<vmem>>, vector<256x128xbf16>
    %cst = arith.constant dense<0.000000e+00> : vector<32x128xf32>
    %3 = tpu.matmul %1, %2, %cst {dimension_numbers = #tpu.dot_dimension_numbers<[1], [0], [0], [1], [0, 0, 1, 1], [], []>} : vector<32x256xbf16>, vector<256x128xbf16>, vector<32x128xf32> -> vector<32x128xf32>
    %c0_3 = arith.constant 0 : index
    %c0_4 = arith.constant 0 : index
    %4 = vector.load %arg3[%c0_3, %c0_4] : memref<1x128xf32, #tpu.memory_space<vmem>>, vector<1x128xf32>
    %5 = vector.broadcast %4 : vector<1x128xf32> to vector<32x128xf32>
    %6 = arith.addf %3, %5 : vector<32x128xf32>
    %cst_5 = arith.constant 0.000000e+00 : f32
    %7 = vector.broadcast %cst_5 : f32 to vector<32x128xf32>
    %8 = arith.cmpf ogt, %6, %7 : vector<32x128xf32>
    %cst_6 = arith.constant 2.000000e-01 : f32
    %9 = vector.broadcast %cst_6 : f32 to vector<32x128xf32>
    %10 = arith.mulf %9, %6 : vector<32x128xf32>
    %11 = arith.select %8, %6, %10 : vector<32x128xi1>, vector<32x128xf32>
    %12 = arith.truncf %11 : vector<32x128xf32> to vector<32x128xbf16>
    %c0_7 = arith.constant 0 : index
    %c0_8 = arith.constant 0 : index
    %13 = vector.load %arg4[%c0_7, %c0_8] : memref<128x64xbf16, #tpu.memory_space<vmem>>, vector<128x64xbf16>
    %cst_9 = arith.constant dense<0.000000e+00> : vector<32x64xf32>
    %14 = tpu.matmul %12, %13, %cst_9 {dimension_numbers = #tpu.dot_dimension_numbers<[1], [0], [0], [1], [0, 0, 1, 1], [], []>} : vector<32x128xbf16>, vector<128x64xbf16>, vector<32x64xf32> -> vector<32x64xf32>
    %c0_10 = arith.constant 0 : index
    %c0_11 = arith.constant 0 : index
    %15 = vector.load %arg5[%c0_10, %c0_11] : memref<1x64xf32, #tpu.memory_space<vmem>>, vector<1x64xf32>
    %16 = vector.broadcast %15 : vector<1x64xf32> to vector<32x64xf32>
    %17 = arith.addf %14, %16 : vector<32x64xf32>
    %cst_12 = arith.constant 0.000000e+00 : f32
    %18 = vector.broadcast %cst_12 : f32 to vector<32x64xf32>
    %19 = arith.cmpf ogt, %17, %18 : vector<32x64xf32>
    %cst_13 = arith.constant 2.000000e-01 : f32
    %20 = vector.broadcast %cst_13 : f32 to vector<32x64xf32>
    %21 = arith.mulf %20, %17 : vector<32x64xf32>
    %22 = arith.select %19, %17, %21 : vector<32x64xi1>, vector<32x64xf32>
    %23 = arith.truncf %22 : vector<32x64xf32> to vector<32x64xbf16>
    %c0_14 = arith.constant 0 : index
    %c0_15 = arith.constant 0 : index
    %24 = vector.load %arg6[%c0_14, %c0_15] : memref<64x32xbf16, #tpu.memory_space<vmem>>, vector<64x32xbf16>
    %cst_16 = arith.constant dense<0.000000e+00> : vector<32x32xf32>
    %25 = tpu.matmul %23, %24, %cst_16 {dimension_numbers = #tpu.dot_dimension_numbers<[1], [0], [0], [1], [0, 0, 1, 1], [], []>} : vector<32x64xbf16>, vector<64x32xbf16>, vector<32x32xf32> -> vector<32x32xf32>
    %c0_17 = arith.constant 0 : index
    %c0_18 = arith.constant 0 : index
    %26 = vector.load %arg7[%c0_17, %c0_18] : memref<1x32xf32, #tpu.memory_space<vmem>>, vector<1x32xf32>
    %27 = vector.broadcast %26 : vector<1x32xf32> to vector<32x32xf32>
    %28 = arith.addf %25, %27 : vector<32x32xf32>
    %cst_19 = arith.constant 0.000000e+00 : f32
    %29 = vector.broadcast %cst_19 : f32 to vector<32x32xf32>
    %30 = arith.cmpf ogt, %28, %29 : vector<32x32xf32>
    %cst_20 = arith.constant 2.000000e-01 : f32
    %31 = vector.broadcast %cst_20 : f32 to vector<32x32xf32>
    %32 = arith.mulf %31, %28 : vector<32x32xf32>
    %33 = arith.select %30, %28, %32 : vector<32x32xi1>, vector<32x32xf32>
    %34 = arith.truncf %33 : vector<32x32xf32> to vector<32x32xbf16>
    %c0_21 = arith.constant 0 : index
    %c0_22 = arith.constant 0 : index
    %35 = vector.load %arg8[%c0_21, %c0_22] : memref<32x128xbf16, #tpu.memory_space<vmem>>, vector<32x128xbf16>
    %cst_23 = arith.constant dense<0.000000e+00> : vector<32x128xf32>
    %36 = tpu.matmul %34, %35, %cst_23 {dimension_numbers = #tpu.dot_dimension_numbers<[1], [0], [0], [1], [0, 0, 1, 1], [], []>} : vector<32x32xbf16>, vector<32x128xbf16>, vector<32x128xf32> -> vector<32x128xf32>
    %c0_24 = arith.constant 0 : index
    %c0_25 = arith.constant 0 : index
    %37 = vector.load %arg9[%c0_24, %c0_25] : memref<1x128xf32, #tpu.memory_space<vmem>>, vector<1x128xf32>
    %38 = vector.broadcast %37 : vector<1x128xf32> to vector<32x128xf32>
    %39 = arith.addf %36, %38 : vector<32x128xf32>
    %40 = vector.extract_strided_slice %39 {offsets = [0, 0], sizes = [32, 1], strides = [1, 1]} : vector<32x128xf32> to vector<32x1xf32>
    %c0_26 = arith.constant 0 : index
    %c0_27 = arith.constant 0 : index
    %41 = vector.load %arg10[%c0_26, %c0_27] : memref<32x1xf32, #tpu.memory_space<vmem>>, vector<32x1xf32>
    tpu.vector_store %arg10[%c0_26, %c0_27], %40 {strides = array<i32>} : memref<32x1xf32, #tpu.memory_space<vmem>>, vector<32x1xf32>,
    return
  }
  func.func @transform_0(%arg0: i32) -> (i32, i32) {
    %c0_i32 = arith.constant 0 : i32
    %c0_i32_0 = arith.constant 0 : i32
    return %arg0, %c0_i32 : i32, i32
  }
  func.func @transform_1(%arg0: i32) -> (i32, i32) {
    %c0_i32 = arith.constant 0 : i32
    %c0_i32_0 = arith.constant 0 : i32
    %c0_i32_1 = arith.constant 0 : i32
    return %c0_i32, %c0_i32_0 : i32, i32
  }
  func.func @transform_2(%arg0: i32) -> (i32, i32) {
    %c0_i32 = arith.constant 0 : i32
    %c0_i32_0 = arith.constant 0 : i32
    %c0_i32_1 = arith.constant 0 : i32
    return %c0_i32, %c0_i32_0 : i32, i32
  }
  func.func @transform_3(%arg0: i32) -> (i32, i32) {
    %c0_i32 = arith.constant 0 : i32
    %c0_i32_0 = arith.constant 0 : i32
    %c0_i32_1 = arith.constant 0 : i32
    return %c0_i32, %c0_i32_0 : i32, i32
  }
  func.func @transform_4(%arg0: i32) -> (i32, i32) {
    %c0_i32 = arith.constant 0 : i32
    %c0_i32_0 = arith.constant 0 : i32
    %c0_i32_1 = arith.constant 0 : i32
    return %c0_i32, %c0_i32_0 : i32, i32
  }
  func.func @transform_5(%arg0: i32) -> (i32, i32) {
    %c0_i32 = arith.constant 0 : i32
    %c0_i32_0 = arith.constant 0 : i32
    %c0_i32_1 = arith.constant 0 : i32
    return %c0_i32, %c0_i32_0 : i32, i32
  }
  func.func @transform_6(%arg0: i32) -> (i32, i32) {
    %c0_i32 = arith.constant 0 : i32
    %c0_i32_0 = arith.constant 0 : i32
    %c0_i32_1 = arith.constant 0 : i32
    return %c0_i32, %c0_i32_0 : i32, i32
  }
  func.func @transform_7(%arg0: i32) -> (i32, i32) {
    %c0_i32 = arith.constant 0 : i32
    %c0_i32_0 = arith.constant 0 : i32
    %c0_i32_1 = arith.constant 0 : i32
    return %c0_i32, %c0_i32_0 : i32, i32
  }
  func.func @transform_8(%arg0: i32) -> (i32, i32) {
    %c0_i32 = arith.constant 0 : i32
    %c0_i32_0 = arith.constant 0 : i32
    %c0_i32_1 = arith.constant 0 : i32
    return %c0_i32, %c0_i32_0 : i32, i32
  }
  func.func @transform_9(%arg0: i32) -> (i32, i32) {
    %c0_i32 = arith.constant 0 : i32
    %c0_i32_0 = arith.constant 0 : i32
    return %arg0, %c0_i32 : i32, i32
  }
}

</mosaic_0001>

<llo_original>
// kernel: tpu_custom_call.1
$region0: #{tpu_custom_call.1}
  #allocation0 [shape = 'u32[]', space=smem, size = 0x4, offset = 0x4, fixed_abs, tag = 'smem constant byte address 0x4 - core index']
  #allocation1 [shape = 'u32[144,128]{1,0:T(1,128)}', space=vmem, size = 0x12000, scoped, tag = 'internal scratch']
  %s0 = inlined_call_operand.hbm [shape: f32[32,256], index: 0, kind: input, shape index: {}]
  %s1 = inlined_call_operand.vmem [shape: bf16[256,128], index: 1, kind: input, shape index: {}]
  %s2 = inlined_call_operand.vmem [shape: f32[1,128], index: 2, kind: input, shape index: {}]
  %s3 = inlined_call_operand.vmem [shape: bf16[128,64], index: 3, kind: input, shape index: {}]
  %s4 = inlined_call_operand.vmem [shape: f32[1,64], index: 4, kind: input, shape index: {}]
  %s5 = inlined_call_operand.vmem [shape: bf16[64,32], index: 5, kind: input, shape index: {}]
  %s6 = inlined_call_operand.vmem [shape: f32[1,32], index: 6, kind: input, shape index: {}]
  %s7 = inlined_call_operand.vmem [shape: bf16[32,128], index: 7, kind: input, shape index: {}]
  %s8 = inlined_call_operand.vmem [shape: f32[1,128], index: 8, kind: input, shape index: {}]
  %s9 = inlined_call_operand.vmem [shape: f32[32,1], index: 9, kind: output, shape index: {}]
  %s10 = sld [smem:[#allocation0]]
  $region50: #{tpu_custom_call.1} parent=0
    _
  %s12 = ssub.s32 1, %s10
  %s13 = scalar_select 0, %s12, %s10
  $region1: #{tpu_custom_call.1} parent=0
    #allocation2 [shape = 'u8[32768]{0}', space=vmem, size = 0x8000, scoped, tag = 'input window, operand 0, single buffered']
    #allocation3 [shape = 's32[1]{0}', space=sflag, size = 0x4, scoped, tag = 'scoped memory for tpu_custom_call.1']
    %14 = vsyncpa [#allocation3], 0
    // Predicated region
    $region2: #{tpu_custom_call.1} parent=1 // pred_check
      _
    $region3: #{tpu_custom_call.1} parent=1 // pred_check_branch
      %16 = sbr.rel (0) target = $region5
    $region4: #{tpu_custom_call.1} parent=1 // pred_region
      %s18 = ssub.s32 1024, 1024
      %19 = vsyncadd [#allocation3], %s18
      %s20 = sshll.u32 [#allocation2], 4
      %s21 = int_to_ptr.vmem [resolvable:$true] %s20
      %26 = dma.hbm_to_vmem [thread:$0]  %s0, 1024, %s21, [#allocation3], 256, 256, 16
    $region5: #{tpu_custom_call.1} parent=1 // pred_fallthru
      _
    // Predicated region
    $region6: #{tpu_custom_call.1} parent=1 // pred_check
      _
    $region7: #{tpu_custom_call.1} parent=1 // pred_check_branch
      %28 = sbr.rel (0) target = $region9
    $region8: #{tpu_custom_call.1} parent=1 // pred_region
      _
    $region9: #{tpu_custom_call.1} parent=1 // pred_fallthru
      _
    // Predicated region
    $region10: #{tpu_custom_call.1} parent=1 // pred_check
      _
    $region11: #{tpu_custom_call.1} parent=1 // pred_check_branch
      %30 = sbr.rel (0) target = $region13
    $region12: #{tpu_custom_call.1} parent=1 // pred_region
      _
    $region13: #{tpu_custom_call.1} parent=1 // pred_fallthru
      _
    // Predicated region
    $region14: #{tpu_custom_call.1} parent=1 // pred_check
      _
    $region15: #{tpu_custom_call.1} parent=1 // pred_check_branch
      %32 = sbr.rel (0) target = $region17
    $region16: #{tpu_custom_call.1} parent=1 // pred_region
      _
    $region17: #{tpu_custom_call.1} parent=1 // pred_fallthru
      _
    // Predicated region
    $region18: #{tpu_custom_call.1} parent=1 // pred_check
      _
    $region19: #{tpu_custom_call.1} parent=1 // pred_check_branch
      %34 = sbr.rel (0) target = $region21
    $region20: #{tpu_custom_call.1} parent=1 // pred_region
      _
    $region21: #{tpu_custom_call.1} parent=1 // pred_fallthru
      _
    // Predicated region
    $region22: #{tpu_custom_call.1} parent=1 // pred_check
      _
    $region23: #{tpu_custom_call.1} parent=1 // pred_check_branch
      %36 = sbr.rel (0) target = $region25
    $region24: #{tpu_custom_call.1} parent=1 // pred_region
      _
    $region25: #{tpu_custom_call.1} parent=1 // pred_fallthru
      _
    // Predicated region
    $region26: #{tpu_custom_call.1} parent=1 // pred_check
      _
    $region27: #{tpu_custom_call.1} parent=1 // pred_check_branch
      %38 = sbr.rel (0) target = $region29
    $region28: #{tpu_custom_call.1} parent=1 // pred_region
      _
    $region29: #{tpu_custom_call.1} parent=1 // pred_fallthru
      _
    // Predicated region
    $region30: #{tpu_custom_call.1} parent=1 // pred_check
      _
    $region31: #{tpu_custom_call.1} parent=1 // pred_check_branch
      %40 = sbr.rel (0) target = $region33
    $region32: #{tpu_custom_call.1} parent=1 // pred_region
      _
    $region33: #{tpu_custom_call.1} parent=1 // pred_fallthru
      _
    // Predicated region
    $region34: #{tpu_custom_call.1} parent=1 // pred_check
      _
    $region35: #{tpu_custom_call.1} parent=1 // pred_check_branch
      %42 = sbr.rel (0) target = $region37
    $region36: #{tpu_custom_call.1} parent=1 // pred_region
      _
    $region37: #{tpu_custom_call.1} parent=1 // pred_fallthru
      _
    // Predicated region
    $region38: #{tpu_custom_call.1} parent=1 // pred_check
      _
    $region39: #{tpu_custom_call.1} parent=1 // pred_check_branch
      %44 = sbr.rel (0) target = $region41
    $region40: #{tpu_custom_call.1} parent=1 // pred_region
      %45 = dma.done [#allocation3], 1024
    $region41: #{tpu_custom_call.1} parent=1 // pred_fallthru
      _
    %v47 = vld [vmem:[#allocation2] sm:$0xff]
    %v48 = vld [vmem:[#allocation2 + $0x8] sm:$0xff]
    %v49 = vld [vmem:[#allocation2 + $0x10] sm:$0xff]
    %v50 = vld [vmem:[#allocation2 + $0x18] sm:$0xff]
    %v51 = vld [vmem:[#allocation2 + $0x20] sm:$0xff]
    %v52 = vld [vmem:[#allocation2 + $0x28] sm:$0xff]
    %v53 = vld [vmem:[#allocation2 + $0x30] sm:$0xff]
    %v54 = vld [vmem:[#allocation2 + $0x38] sm:$0xff]
    %v55 = vpack.c.bf16 %v49, %v47
    %v56 = vpack.c.bf16 %v50, %v48
    %v57 = vpack.c.bf16 %v53, %v51
    %v58 = vpack.c.bf16 %v54, %v52
    %v59 = vld [vmem:[%s1] sm:$0xf]
    %v60 = vld [vmem:[%s1 + $0x4] sm:$0xf]
    %v61 = vld [vmem:[%s1 + $0x8] sm:$0xf]
    %v62 = vld [vmem:[%s1 + $0xc] sm:$0xf]
    %v63 = vld [vmem:[%s1 + $0x10] sm:$0xf]
    %v64 = vld [vmem:[%s1 + $0x14] sm:$0xf]
    %v65 = vld [vmem:[%s1 + $0x18] sm:$0xf]
    %v66 = vld [vmem:[%s1 + $0x1c] sm:$0xf]
    %v67 = vld [vmem:[%s1 + $0x20] sm:$0xf]
    %v68 = vld [vmem:[%s1 + $0x24] sm:$0xf]
    %v69 = vld [vmem:[%s1 + $0x28] sm:$0xf]
    %v70 = vld [vmem:[%s1 + $0x2c] sm:$0xf]
    %v71 = vld [vmem:[%s1 + $0x30] sm:$0xf]
    %v72 = vld [vmem:[%s1 + $0x34] sm:$0xf]
    %v73 = vld [vmem:[%s1 + $0x38] sm:$0xf]
    %v74 = vld [vmem:[%s1 + $0x3c] sm:$0xf]
    %v75 = vld [vmem:[%s1 + $0x40] sm:$0xf]
    %v76 = vld [vmem:[%s1 + $0x44] sm:$0xf]
    %v77 = vld [vmem:[%s1 + $0x48] sm:$0xf]
    %v78 = vld [vmem:[%s1 + $0x4c] sm:$0xf]
    %v79 = vld [vmem:[%s1 + $0x50] sm:$0xf]
    %v80 = vld [vmem:[%s1 + $0x54] sm:$0xf]
    %v81 = vld [vmem:[%s1 + $0x58] sm:$0xf]
    %v82 = vld [vmem:[%s1 + $0x5c] sm:$0xf]
    %v83 = vld [vmem:[%s1 + $0x60] sm:$0xf]
    %v84 = vld [vmem:[%s1 + $0x64] sm:$0xf]
    %v85 = vld [vmem:[%s1 + $0x68] sm:$0xf]
    %v86 = vld [vmem:[%s1 + $0x6c] sm:$0xf]
    %v87 = vld [vmem:[%s1 + $0x70] sm:$0xf]
    %v88 = vld [vmem:[%s1 + $0x74] sm:$0xf]
    %v89 = vld [vmem:[%s1 + $0x78] sm:$0xf]
    %v90 = vld [vmem:[%s1 + $0x7c] sm:$0xf]
    %v91 = vld [vmem:[%s2] sm:$0x1]
    %v93 = vlaneseq
    %v94 = vshrl.u32 %v93, 7
    %v95 = vsub.s32 0, %v94
    %v96 = vrot.slane %v91, %v95
    %v130 = vunpack.c.l.b16 %v59
    %v131 = vunpack.c.l.b16 %v60
    %v132 = vunpack.c.l.b16 %v61
    %v133 = vunpack.c.l.b16 %v62
    %v134 = vunpack.c.l.b16 %v63
    %v135 = vunpack.c.l.b16 %v64
    %v136 = vunpack.c.l.b16 %v65
    %v137 = vunpack.c.l.b16 %v66
    %v138 = vunpack.c.l.b16 %v67
    %v139 = vunpack.c.l.b16 %v68
    %v140 = vunpack.c.l.b16 %v69
    %v141 = vunpack.c.l.b16 %v70
    %v142 = vunpack.c.l.b16 %v71
    %v143 = vunpack.c.l.b16 %v72
    %v144 = vunpack.c.l.b16 %v73
    %v145 = vunpack.c.l.b16 %v74
    %v146 = vunpack.c.l.b16 %v75
    %v147 = vunpack.c.l.b16 %v76
    %v148 = vunpack.c.l.b16 %v77
    %v149 = vunpack.c.l.b16 %v78
    %v150 = vunpack.c.l.b16 %v79
    %v151 = vunpack.c.l.b16 %v80
    %v152 = vunpack.c.l.b16 %v81
    %v153 = vunpack.c.l.b16 %v82
    %v154 = vunpack.c.l.b16 %v83
    %v155 = vunpack.c.l.b16 %v84
    %v156 = vunpack.c.l.b16 %v85
    %v157 = vunpack.c.l.b16 %v86
    %v158 = vunpack.c.l.b16 %v87
    %v159 = vunpack.c.l.b16 %v88
    %v160 = vunpack.c.l.b16 %v89
    %v161 = vunpack.c.l.b16 %v90
    %v162 = vpack.c.b16 %v131, %v130
    %v163 = vpack.c.b16 %v133, %v132
    %v164 = vpack.c.b16 %v135, %v134
    %v165 = vpack.c.b16 %v137, %v136
    %v166 = vpack.c.b16 %v139, %v138
    %v167 = vpack.c.b16 %v141, %v140
    %v168 = vpack.c.b16 %v143, %v142
    %v169 = vpack.c.b16 %v145, %v144
    %v170 = vpack.c.b16 %v147, %v146
    %v171 = vpack.c.b16 %v149, %v148
    %v172 = vpack.c.b16 %v151, %v150
    %v173 = vpack.c.b16 %v153, %v152
    %v174 = vpack.c.b16 %v155, %v154
    %v175 = vpack.c.b16 %v157, %v156
    %v176 = vpack.c.b16 %v159, %v158
    %v177 = vpack.c.b16 %v161, %v160
    %194 = vmatprep.subr.bf16.mxu0 0
    %195 = vmatpush1.bf16.msra.mxu0 %v169
    %196 = vmatprep.subr.bf16.mxu0 0
    %197 = vmatpush1.bf16.msra.mxu0 %v168
    %198 = vmatprep.subr.bf16.mxu0 0
    %199 = vmatpush1.bf16.msra.mxu0 %v167
    %200 = vmatprep.subr.bf16.mxu0 0
    %201 = vmatpush1.bf16.msra.mxu0 %v166
    %202 = vmatprep.subr.bf16.mxu0 0
    %203 = vmatpush1.bf16.msra.mxu0 %v165
    %204 = vmatprep.subr.bf16.mxu0 0
    %205 = vmatpush1.bf16.msra.mxu0 %v164
    %206 = vmatprep.subr.bf16.mxu0 0
    %207 = vmatpush1.bf16.msra.mxu0 %v163
    %208 = vmatprep.subr.bf16.mxu0 0
    %209 = vmatpush1.bf16.msra.mxu0 %v162
    %210 = vmatprep.subr.bf16.mxu0 0
    %211 = vmatpush2.bf16.msra.mxu0 %v177
    %212 = vmatprep.subr.bf16.mxu0 0
    %213 = vmatpush2.bf16.msra.mxu0 %v176
    %214 = vmatprep.subr.bf16.mxu0 0
    %215 = vmatpush2.bf16.msra.mxu0 %v175
    %216 = vmatprep.subr.bf16.mxu0 0
    %217 = vmatpush2.bf16.msra.mxu0 %v174
    %218 = vmatprep.subr.bf16.mxu0 0
    %219 = vmatpush2.bf16.msra.mxu0 %v173
    %220 = vmatprep.subr.bf16.mxu0 0
    %221 = vmatpush2.bf16.msra.mxu0 %v172
    %222 = vmatprep.subr.bf16.mxu0 0
    %223 = vmatpush2.bf16.msra.mxu0 %v171
    %224 = vmatprep.subr.bf16.mxu0 0
    %225 = vmatpush2.bf16.msra.mxu0 %v170
    %226 = vmatprep.mubr.bf16.mxu0 %v56
    %227 = vmatmul.mubr.bf16.gmra.mxu0 %v55
    %v228 = vpop.f32.mrf.mxu0
    %v229 = vadd.f32 %v96, %v228
    %v230 = vpop.f32.mrf.mxu0
    %v231 = vpop.f32.mrf.mxu0
    %v232 = vadd.f32 %v96, %v231
    %v233 = vpop.f32.mrf.mxu0
    %234 = vmatprep.mubr.bf16.mxu0 %v58
    %235 = vmatmul.mubr.bf16.gmra.mxu0 %v57
    %v236 = vpop.f32.mrf.mxu0
    %v237 = vadd.f32 %v96, %v236
    %v238 = vpop.f32.mrf.mxu0
    %v239 = vpop.f32.mrf.mxu0
    %v240 = vadd.f32 %v96, %v239
    %v241 = vpop.f32.mrf.mxu0
    %242 = vdwg.mxu0
    %vm243 = vcmp.gt.f32.partialorder %v229, 0.0
    %vm244 = vcmp.gt.f32.partialorder %v232, 0.0
    %vm245 = vcmp.gt.f32.partialorder %v237, 0.0
    %vm246 = vcmp.gt.f32.partialorder %v240, 0.0
    %v247 = vmul.f32 %v229, 0.2
    %v248 = vmul.f32 %v232, 0.2
    %v249 = vmul.f32 %v237, 0.2
    %v250 = vmul.f32 %v240, 0.2
    %v251 = vsel %vm243, %v229, %v247
    %v252 = vsel %vm244, %v232, %v248
    %v253 = vsel %vm245, %v237, %v249
    %v254 = vsel %vm246, %v240, %v250
    %v255 = vpack.c.bf16 %v252, %v251
    %v256 = vpack.c.bf16 %v254, %v253
    %v257 = vld [vmem:[%s3] sm:$0xf]
    %v258 = vld [vmem:[%s3 + $0x4] sm:$0xf]
    %v259 = vld [vmem:[%s3 + $0x8] sm:$0xf]
    %v260 = vld [vmem:[%s3 + $0xc] sm:$0xf]
    %v261 = vld [vmem:[%s3 + $0x10] sm:$0xf]
    %v262 = vld [vmem:[%s3 + $0x14] sm:$0xf]
    %v263 = vld [vmem:[%s3 + $0x18] sm:$0xf]
    %v264 = vld [vmem:[%s3 + $0x1c] sm:$0xf]
    %v265 = vld [vmem:[%s3 + $0x20] sm:$0xf]
    %v266 = vld [vmem:[%s3 + $0x24] sm:$0xf]
    %v267 = vld [vmem:[%s3 + $0x28] sm:$0xf]
    %v268 = vld [vmem:[%s3 + $0x2c] sm:$0xf]
    %v269 = vld [vmem:[%s3 + $0x30] sm:$0xf]
    %v270 = vld [vmem:[%s3 + $0x34] sm:$0xf]
    %v271 = vld [vmem:[%s3 + $0x38] sm:$0xf]
    %v272 = vld [vmem:[%s3 + $0x3c] sm:$0xf]
    %v273 = vld [vmem:[%s4] sm:$0x1]
    %v275 = vlaneseq
    %v276 = vshrl.u32 %v275, 7
    %v277 = vsub.s32 0, %v276
    %v278 = vrot.slane %v273, %v277
    %v296 = vunpack.c.l.b16 %v257
    %v297 = vunpack.c.l.b16 %v258
    %v298 = vunpack.c.l.b16 %v259
    %v299 = vunpack.c.l.b16 %v260
    %v300 = vunpack.c.l.b16 %v261
    %v301 = vunpack.c.l.b16 %v262
    %v302 = vunpack.c.l.b16 %v263
    %v303 = vunpack.c.l.b16 %v264
    %v304 = vunpack.c.l.b16 %v265
    %v305 = vunpack.c.l.b16 %v266
    %v306 = vunpack.c.l.b16 %v267
    %v307 = vunpack.c.l.b16 %v268
    %v308 = vunpack.c.l.b16 %v269
    %v309 = vunpack.c.l.b16 %v270
    %v310 = vunpack.c.l.b16 %v271
    %v311 = vunpack.c.l.b16 %v272
    %v312 = vpack.c.b16 %v297, %v296
    %v313 = vpack.c.b16 %v299, %v298
    %v314 = vpack.c.b16 %v301, %v300
    %v315 = vpack.c.b16 %v303, %v302
    %v316 = vpack.c.b16 %v305, %v304
    %v317 = vpack.c.b16 %v307, %v306
    %v318 = vpack.c.b16 %v309, %v308
    %v319 = vpack.c.b16 %v311, %v310
    %328 = vmatprep.subr.bf16.mxu0 0
    %329 = vmatpush1.bf16.msra.mxu0 %v319
    %330 = vmatprep.subr.bf16.mxu0 0
    %331 = vmatpush1.bf16.msra.mxu0 %v318
    %332 = vmatprep.subr.bf16.mxu0 0
    %333 = vmatpush1.bf16.msra.mxu0 %v317
    %334 = vmatprep.subr.bf16.mxu0 0
    %335 = vmatpush1.bf16.msra.mxu0 %v316
    %336 = vmatprep.subr.bf16.mxu0 0
    %337 = vmatpush1.bf16.msra.mxu0 %v315
    %338 = vmatprep.subr.bf16.mxu0 0
    %339 = vmatpush1.bf16.msra.mxu0 %v314
    %340 = vmatprep.subr.bf16.mxu0 0
    %341 = vmatpush1.bf16.msra.mxu0 %v313
    %342 = vmatprep.subr.bf16.mxu0 0
    %343 = vmatpush1.bf16.msra.mxu0 %v312
    %344 = vmatprep.subr.bf16.mxu0 0
    %345 = vmatpush2.bf16.msra.mxu0 0
    %346 = vmatprep.subr.bf16.mxu0 0
    %347 = vmatpush2.bf16.msra.mxu0 0
    %348 = vmatprep.subr.bf16.mxu0 0
    %349 = vmatpush2.bf16.msra.mxu0 0
    %350 = vmatprep.subr.bf16.mxu0 0
    %351 = vmatpush2.bf16.msra.mxu0 0
    %352 = vmatprep.subr.bf16.mxu0 0
    %353 = vmatpush2.bf16.msra.mxu0 0
    %354 = vmatprep.subr.bf16.mxu0 0
    %355 = vmatpush2.bf16.msra.mxu0 0
    %356 = vmatprep.subr.bf16.mxu0 0
    %357 = vmatpush2.bf16.msra.mxu0 0
    %358 = vmatprep.subr.bf16.mxu0 0
    %359 = vmatpush2.bf16.msra.mxu0 0
    %360 = vmatprep.mubr.bf16.mxu0 0
    %361 = vmatmul.mubr.bf16.gmra.mxu0 %v255
    %v362 = vpop.f32.mrf.mxu0
    %v363 = vadd.f32 %v278, %v362
    %v364 = vpop.f32.mrf.mxu0
    %v365 = vpop.f32.mrf.mxu0
    %v366 = vadd.f32 %v278, %v365
    %v367 = vpop.f32.mrf.mxu0
    %368 = vmatprep.mubr.bf16.mxu0 0
    %369 = vmatmul.mubr.bf16.gmra.mxu0 %v256
    %v370 = vpop.f32.mrf.mxu0
    %v371 = vadd.f32 %v278, %v370
    %v372 = vpop.f32.mrf.mxu0
    %v373 = vpop.f32.mrf.mxu0
    %v374 = vadd.f32 %v278, %v373
    %v375 = vpop.f32.mrf.mxu0
    %376 = vdwg.mxu0
    %vm377 = vcmp.gt.f32.partialorder %v363, 0.0
    %vm378 = vcmp.gt.f32.partialorder %v366, 0.0
    %vm379 = vcmp.gt.f32.partialorder %v371, 0.0
    %vm380 = vcmp.gt.f32.partialorder %v374, 0.0
    %v381 = vmul.f32 %v363, 0.2
    %v382 = vmul.f32 %v366, 0.2
    %v383 = vmul.f32 %v371, 0.2
    %v384 = vmul.f32 %v374, 0.2
    %v385 = vsel %vm377, %v363, %v381
    %v386 = vsel %vm378, %v366, %v382
    %v387 = vsel %vm379, %v371, %v383
    %v388 = vsel %vm380, %v374, %v384
    %v389 = vpack.c.bf16 %v386, %v385
    %v390 = vpack.c.bf16 %v388, %v387
    %v391 = vld [vmem:[%s5] sm:$0xf]
    %v392 = vld [vmem:[%s5 + $0x4] sm:$0xf]
    %v393 = vld [vmem:[%s5 + $0x8] sm:$0xf]
    %v394 = vld [vmem:[%s5 + $0xc] sm:$0xf]
    %v395 = vld [vmem:[%s5 + $0x10] sm:$0xf]
    %v396 = vld [vmem:[%s5 + $0x14] sm:$0xf]
    %v397 = vld [vmem:[%s5 + $0x18] sm:$0xf]
    %v398 = vld [vmem:[%s5 + $0x1c] sm:$0xf]
    %v399 = vld [vmem:[%s6] sm:$0x1]
    %v401 = vlaneseq
    %v402 = vshrl.u32 %v401, 7
    %v403 = vsub.s32 0, %v402
    %v404 = vrot.slane %v399, %v403
    %v414 = vunpack.c.l.b16 %v391
    %v415 = vunpack.c.l.b16 %v392
    %v416 = vunpack.c.l.b16 %v393
    %v417 = vunpack.c.l.b16 %v394
    %v418 = vunpack.c.l.b16 %v395
    %v419 = vunpack.c.l.b16 %v396
    %v420 = vunpack.c.l.b16 %v397
    %v421 = vunpack.c.l.b16 %v398
    %v422 = vpack.c.b16 %v415, %v414
    %v423 = vpack.c.b16 %v417, %v416
    %v424 = vpack.c.b16 %v419, %v418
    %v425 = vpack.c.b16 %v421, %v420
    %vm430 = vcmask 523264
    %v432 = vsel %vm430, %v389, 0
    %v435 = vsel %vm430, %v390, 0
    %437 = vmatprep.subr.bf16.mxu0 0
    %438 = vmatpush1.bf16.msra.mxu0 0
    %439 = vmatprep.subr.bf16.mxu0 0
    %440 = vmatpush1.bf16.msra.mxu0 0
    %441 = vmatprep.subr.bf16.mxu0 0
    %442 = vmatpush1.bf16.msra.mxu0 0
    %443 = vmatprep.subr.bf16.mxu0 0
    %444 = vmatpush1.bf16.msra.mxu0 0
    %445 = vmatprep.subr.bf16.mxu0 0
    %446 = vmatpush1.bf16.msra.mxu0 %v425
    %447 = vmatprep.subr.bf16.mxu0 0
    %448 = vmatpush1.bf16.msra.mxu0 %v424
    %449 = vmatprep.subr.bf16.mxu0 0
    %450 = vmatpush1.bf16.msra.mxu0 %v423
    %451 = vmatprep.subr.bf16.mxu0 0
    %452 = vmatpush1.bf16.msra.mxu0 %v422
    %453 = vmatprep.subr.bf16.mxu0 0
    %454 = vmatpush2.bf16.msra.mxu0 0
    %455 = vmatprep.subr.bf16.mxu0 0
    %456 = vmatpush2.bf16.msra.mxu0 0
    %457 = vmatprep.subr.bf16.mxu0 0
    %458 = vmatpush2.bf16.msra.mxu0 0
    %459 = vmatprep.subr.bf16.mxu0 0
    %460 = vmatpush2.bf16.msra.mxu0 0
    %461 = vmatprep.subr.bf16.mxu0 0
    %462 = vmatpush2.bf16.msra.mxu0 0
    %463 = vmatprep.subr.bf16.mxu0 0
    %464 = vmatpush2.bf16.msra.mxu0 0
    %465 = vmatprep.subr.bf16.mxu0 0
    %466 = vmatpush2.bf16.msra.mxu0 0
    %467 = vmatprep.subr.bf16.mxu0 0
    %468 = vmatpush2.bf16.msra.mxu0 0
    %469 = vmatprep.mubr.bf16.mxu0 0
    %470 = vmatmul.mubr.bf16.gmra.mxu0 %v432
    %v471 = vpop.f32.mrf.mxu0
    %v472 = vadd.f32 %v404, %v471
    %v473 = vpop.f32.mrf.mxu0
    %v474 = vpop.f32.mrf.mxu0
    %v475 = vadd.f32 %v404, %v474
    %v476 = vpop.f32.mrf.mxu0
    %477 = vmatprep.mubr.bf16.mxu0 0
    %478 = vmatmul.mubr.bf16.gmra.mxu0 %v435
    %v479 = vpop.f32.mrf.mxu0
    %v480 = vadd.f32 %v404, %v479
    %v481 = vpop.f32.mrf.mxu0
    %v482 = vpop.f32.mrf.mxu0
    %v483 = vadd.f32 %v404, %v482
    %v484 = vpop.f32.mrf.mxu0
    %485 = vdwg.mxu0
    %vm486 = vcmp.gt.f32.partialorder %v472, 0.0
    %vm487 = vcmp.gt.f32.partialorder %v475, 0.0
    %vm488 = vcmp.gt.f32.partialorder %v480, 0.0
    %vm489 = vcmp.gt.f32.partialorder %v483, 0.0
    %v490 = vmul.f32 %v472, 0.2
    %v491 = vmul.f32 %v475, 0.2
    %v492 = vmul.f32 %v480, 0.2
    %v493 = vmul.f32 %v483, 0.2
    %v494 = vsel %vm486, %v472, %v490
    %v495 = vsel %vm487, %v475, %v491
    %v496 = vsel %vm488, %v480, %v492
    %v497 = vsel %vm489, %v483, %v493
    %v498 = vpack.c.bf16 %v495, %v494
    %v499 = vpack.c.bf16 %v497, %v496
    %v500 = vld [vmem:[%s7] sm:$0xf]
    %v501 = vld [vmem:[%s7 + $0x4] sm:$0xf]
    %v502 = vld [vmem:[%s7 + $0x8] sm:$0xf]
    %v503 = vld [vmem:[%s7 + $0xc] sm:$0xf]
    %v504 = vld [vmem:[%s8] sm:$0x1]
    %v506 = vlaneseq
    %v507 = vshrl.u32 %v506, 7
    %v508 = vsub.s32 0, %v507
    %v509 = vrot.slane %v504, %v508
    %v515 = vunpack.c.l.b16 %v500
    %v516 = vunpack.c.l.b16 %v501
    %v517 = vunpack.c.l.b16 %v502
    %v518 = vunpack.c.l.b16 %v503
    %v519 = vpack.c.b16 %v516, %v515
    %v520 = vpack.c.b16 %v518, %v517
    %vm523 = vcmask 261120
    %v525 = vsel %vm523, %v498, 0
    %v528 = vsel %vm523, %v499, 0
    %530 = vmatprep.subr.bf16.mxu0 0
    %531 = vmatpush1.bf16.msra.mxu0 0
    %532 = vmatprep.subr.bf16.mxu0 0
    %533 = vmatpush1.bf16.msra.mxu0 0
    %534 = vmatprep.subr.bf16.mxu0 0
    %535 = vmatpush1.bf16.msra.mxu0 0
    %536 = vmatprep.subr.bf16.mxu0 0
    %537 = vmatpush1.bf16.msra.mxu0 0
    %538 = vmatprep.subr.bf16.mxu0 0
    %539 = vmatpush1.bf16.msra.mxu0 0
    %540 = vmatprep.subr.bf16.mxu0 0
    %541 = vmatpush1.bf16.msra.mxu0 0
    %542 = vmatprep.subr.bf16.mxu0 0
    %543 = vmatpush1.bf16.msra.mxu0 %v520
    %544 = vmatprep.subr.bf16.mxu0 0
    %545 = vmatpush1.bf16.msra.mxu0 %v519
    %546 = vmatprep.subr.bf16.mxu0 0
    %547 = vmatpush2.bf16.msra.mxu0 0
    %548 = vmatprep.subr.bf16.mxu0 0
    %549 = vmatpush2.bf16.msra.mxu0 0
    %550 = vmatprep.subr.bf16.mxu0 0
    %551 = vmatpush2.bf16.msra.mxu0 0
    %552 = vmatprep.subr.bf16.mxu0 0
    %553 = vmatpush2.bf16.msra.mxu0 0
    %554 = vmatprep.subr.bf16.mxu0 0
    %555 = vmatpush2.bf16.msra.mxu0 0
    %556 = vmatprep.subr.bf16.mxu0 0
    %557 = vmatpush2.bf16.msra.mxu0 0
    %558 = vmatprep.subr.bf16.mxu0 0
    %559 = vmatpush2.bf16.msra.mxu0 0
    %560 = vmatprep.subr.bf16.mxu0 0
    %561 = vmatpush2.bf16.msra.mxu0 0
    %562 = vmatprep.mubr.bf16.mxu0 0
    %563 = vmatmul.mubr.bf16.gmra.mxu0 %v525
    %v564 = vpop.f32.mrf.mxu0
    %v565 = vadd.f32 %v509, %v564
    %v566 = vpop.f32.mrf.mxu0
    %v567 = vpop.f32.mrf.mxu0
    %v568 = vadd.f32 %v509, %v567
    %v569 = vpop.f32.mrf.mxu0
    %570 = vmatprep.mubr.bf16.mxu0 0
    %571 = vmatmul.mubr.bf16.gmra.mxu0 %v528
    %v572 = vpop.f32.mrf.mxu0
    %v573 = vadd.f32 %v509, %v572
    %v574 = vpop.f32.mrf.mxu0
    %v575 = vpop.f32.mrf.mxu0
    %v576 = vadd.f32 %v509, %v575
    %v577 = vpop.f32.mrf.mxu0
    %578 = vdwg.mxu0
    %vm579 = vcmask 7168
    %580 = vst.msk [vmem:[%s9] sm:$0xff] %vm579, %v565
    %581 = vst.msk [vmem:[%s9 + $0x8] sm:$0xff] %vm579, %v568
    %582 = vst.msk [vmem:[%s9 + $0x10] sm:$0xff] %vm579, %v573
    %583 = vst.msk [vmem:[%s9 + $0x18] sm:$0xff] %vm579, %v576
    // Predicated region
    $region42: #{tpu_custom_call.1} parent=1 // pred_check
      _
    $region43: #{tpu_custom_call.1} parent=1 // pred_check_branch
      %585 = sbr.rel (0) target = $region45
    $region44: #{tpu_custom_call.1} parent=1 // pred_region
      _
    $region45: #{tpu_custom_call.1} parent=1 // pred_fallthru
      _
    // Predicated region
    $region46: #{tpu_custom_call.1} parent=1 // pred_check
      _
    $region47: #{tpu_custom_call.1} parent=1 // pred_check_branch
      %587 = sbr.rel (0) target = $region49
    $region48: #{tpu_custom_call.1} parent=1 // pred_region
      _
    $region49: #{tpu_custom_call.1} parent=1 // pred_fallthru
      _
    %588 = vsyncpa [#allocation3], 1

</llo_original>
